<compile_context>
chip_gen: v6e
topology: v6e:2x2x1
jax: 0.10.0
libtpu: 0.0.40
codegen_flags: <defaults>
</compile_context>

<pallas_src>
import jax
import jax.numpy as jnp
from jax.experimental import pallas as pl
from jax.experimental.pallas import tpu as pltpu

_LANE = 128  # lane width; output is padded to a lane-dense 128-column slab


def _round_up(a: int, b: int) -> int:
    return pl.cdiv(a, b) * b


# --------------------------------------------------------------------------------------
# Kernel: logit -> fc1 -> ReLU -> (conv+fc2 folded) -> sigmoid
# --------------------------------------------------------------------------------------
def cnn_kernel(x_ref, w1_ref, b1_ref, w2_ref, b2_ref, o_ref):
    f32 = jnp.float32
    dot_dt = w1_ref.dtype  # f32 (exact) or bf16 (fast MXU) operands for the two dots

    # ---- input transform: clamp + logit (f32; log/log1p ride the EUP slot) ----
    x = x_ref[...].astype(f32)
    eps = 1e-6
    x = jnp.clip(x, eps, 1.0 - eps)
    x = jnp.log(x) - jnp.log1p(-x)

    # ---- fc1 + ReLU ----
    h = jnp.dot(x.astype(dot_dt), w1_ref[...], preferred_element_type=f32)
    h = jnp.maximum(h + b1_ref[...].astype(f32), 0.0)          # (tile_b, H)

    # ---- Conv1d + flatten + fc2, pre-folded into W2_eff: single (H x out_pad) dot ----
    y = jnp.dot(h.astype(dot_dt), w2_ref[...], preferred_element_type=f32)
    y = y + b2_ref[...].astype(f32)

    # ---- sigmoid, lane-dense padded output ----
    o_ref[...] = jax.nn.sigmoid(y).astype(o_ref.dtype)


# --------------------------------------------------------------------------------------
# Parameter handling (PyTorch layout -> kernel layout, with conv folded into fc2)
# --------------------------------------------------------------------------------------
def init_pytorch_params(key, input_size=768, hidden_units=128, output_size=9,
                        kernel_size=3, conv_channels=16):
    """Parameters in PyTorch layout with nn.Linear / nn.Conv1d default init."""
    ks = jax.random.split(key, 6)

    def uniform(k, shape, fan_in):
        bound = 1.0 / jnp.sqrt(jnp.asarray(fan_in, jnp.float32))
        return jax.random.uniform(k, shape, jnp.float32, -bound, bound)

    conv_len = hidden_units - kernel_size + 1
    return {
        "fc1_w": uniform(ks[0], (hidden_units, input_size), input_size),
        "fc1_b": uniform(ks[1], (hidden_units,), input_size),
        "conv_w": uniform(ks[2], (conv_channels, 1, kernel_size), 1 * kernel_size),
        "conv_b": uniform(ks[3], (conv_channels,), 1 * kernel_size),
        "fc2_w": uniform(ks[4], (output_size, conv_len * conv_channels),
                         conv_len * conv_channels),
        "fc2_b": uniform(ks[5], (output_size,), conv_len * conv_channels),
    }


def prepare_kernel_params(params, *, use_bf16=False, out_pad=_LANE):
    """Rearrange + exactly fold Conv1d taps/bias into fc2.

    y[b, j] = fc2_b[j] + sum_{c,l} fc2_w[j, c*L+l] * (conv_b[c] + sum_k conv_w[c,0,k] * h[b, l+k])
            = bias_eff[j] + sum_m h[b, m] * W2_eff[m, j]
    with W2_eff[m, j] = sum_{c,k : 0 <= m-k < L} conv_w[c,0,k] * fc2_w[j, c*L + (m-k)].
    Pure f32 weight pre-combination (no approximation beyond f32 rounding).
    """
    f32 = jnp.float32
    hp = jax.lax.Precision.HIGHEST
    dot_dt = jnp.bfloat16 if use_bf16 else f32

    hidden = params["fc1_b"].shape[0]
    n_ch, _, ksz = params["conv_w"].shape
    conv_len = hidden - ksz + 1
    out_size = params["fc2_b"].shape[0]
    out_pad = max(out_pad, _round_up(out_size, _LANE))

    # fc1: (out, in) -> (in, out)
    w1 = jnp.asarray(params["fc1_w"], f32).T.astype(dot_dt)               # (D, H)
    b1 = jnp.asarray(params["fc1_b"], f32).reshape(1, hidden)

    # Fold conv into fc2.
    wc = jnp.asarray(params["conv_w"], f32)[:, 0, :]                      # (n_ch, ksz)
    w2t = jnp.asarray(params["fc2_w"], f32).T.reshape(n_ch, conv_len, out_size)  # (c, l, j)
    w2_eff = jnp.zeros((hidden, out_pad), f32)
    for k in range(ksz):
        contrib = jnp.einsum("c,clj->lj", wc[:, k], w2t, precision=hp)    # (L, out)
        w2_eff = w2_eff.at[k:k + conv_len, :out_size].add(contrib)
    b2_eff = (jnp.asarray(params["fc2_b"], f32)
              + jnp.einsum("c,clj->j", jnp.asarray(params["conv_b"], f32), w2t,
                           precision=hp))
    w2 = w2_eff.astype(dot_dt)                                            # (H, out_pad)
    b2 = jnp.zeros((1, out_pad), f32).at[0, :out_size].set(b2_eff)

    return {"w1": w1, "b1": b1, "w2": w2, "b2": b2, "out_size": out_size}


# --------------------------------------------------------------------------------------
# Wrapper
# --------------------------------------------------------------------------------------
def cnn_forward(x, params, *, tile_b=512, use_bf16=False):
    """x: (B, input_size) float32 values in (0, 1). Returns (B, output_size) float32."""
    kp = prepare_kernel_params(params, use_bf16=use_bf16)
    out_size = kp["out_size"]
    out_pad = kp["b2"].shape[-1]
    hidden = kp["b1"].shape[-1]

    x = jnp.asarray(x, jnp.float32)
    B, D = x.shape

    # Batch tiling: large MXU/DMA-friendly tiles, padded tail for arbitrary B.
    tile = max(8, min(_round_up(tile_b, 8), _round_up(B, 8)))
    # v7x: make sure the "parallel" batch axis has >= 2 steps so both TensorCores work.
    if _round_up(B, tile) // tile < 2 and B > 8:
        tile = max(8, _round_up(pl.cdiv(B, 2), 8))
    b_pad = _round_up(B, tile)
    if b_pad != B:
        x = jnp.pad(x, ((0, b_pad - B), (0, 0)), constant_values=0.5)
    grid = (b_pad // tile,)

    out = pl.pallas_call(
        cnn_kernel,
        out_shape=jax.ShapeDtypeStruct((b_pad, out_pad), jnp.float32),
        grid_spec=pltpu.PrefetchScalarGridSpec(
            num_scalar_prefetch=0,
            grid=grid,
            in_specs=[
                pl.BlockSpec((tile, D), lambda i: (i, 0)),
                # Weights/biases: constant block index -> fetched once, reused every step.
                pl.BlockSpec((D, hidden), lambda i: (0, 0)),
                pl.BlockSpec((1, hidden), lambda i: (0, 0)),
                pl.BlockSpec((hidden, out_pad), lambda i: (0, 0)),
                pl.BlockSpec((1, out_pad), lambda i: (0, 0)),
            ],
            out_specs=pl.BlockSpec((tile, out_pad), lambda i: (i, 0)),
        ),
        compiler_params=pltpu.CompilerParams(
            dimension_semantics=("parallel",),   # batch axis: shards across TCs on v7x
        ),
    )(x, kp["w1"], kp["b1"], kp["w2"], kp["b2"])

    return out[:B, :out_size]


# --------------------------------------------------------------------------------------
# Pure-JAX reference (faithful to the PyTorch CNNModel forward, conv NOT folded)
# --------------------------------------------------------------------------------------
def cnn_reference(x, params):
    hp = jax.lax.Precision.HIGHEST
    eps = 1e-6
    h = jnp.clip(x.astype(jnp.float32), eps, 1.0 - eps)
    h = jnp.log(h / (1.0 - h))
    h = jnp.dot(h, params["fc1_w"].T, precision=hp) + params["fc1_b"]
    h = jnp.maximum(h, 0.0)                                         # (B, H)
    wc = params["conv_w"][:, 0, :]                                  # (n_ch, k)
    L = h.shape[1] - wc.shape[1] + 1
    conv = params["conv_b"][None, :, None] + sum(
        h[:, None, k:k + L] * wc[None, :, k:k + 1] for k in range(wc.shape[1]))
    flat = conv.reshape(h.shape[0], -1)                             # (B, n_ch*L), channel-major
    y = jnp.dot(flat, params["fc2_w"].T, precision=hp) + params["fc2_b"]
    return jax.nn.sigmoid(y)


if __name__ == "__main__":
    key = jax.random.PRNGKey(0)
    k_x, k_p = jax.random.split(key)

    B, INPUT, HIDDEN, OUT = 100, 768, 128, 9
    # Inputs are probabilities in (0, 1) (the module starts with a logit transform).
    x = jax.random.uniform(k_x, (B, INPUT), jnp.float32, 0.0, 1.0)
    params = init_pytorch_params(k_p, INPUT, HIDDEN, OUT)

    ref = cnn_reference(x, params)

    # f32 path with a small tile: exercises the padded tail and a multi-step grid (4 steps).
    out_f32 = jax.block_until_ready(cnn_forward(x, params, tile_b=32, use_bf16=False))
    assert out_f32.shape == (B, OUT)
    assert float(jnp.max(jnp.abs(out_f32 - ref))) < 2e-3, "f32 kernel mismatch vs reference"

    # Default path (tile capped so grid has 2 steps for B=100) with bf16 dot operands
    # (f32 logit + f32 accumulation) — the recommended fast path, esp. on v5e.
    out_bf16 = jax.block_until_ready(cnn_forward(x, params, use_bf16=True))
    assert out_bf16.shape == (B, OUT)
    assert float(jnp.max(jnp.abs(out_bf16 - ref))) < 3e-2, "bf16 kernel mismatch vs reference"

    print("KERNEL_OK")
</pallas_src>

<mosaic_0001>
module attributes {stable_mosaic.version = 11 : i64} {
  func.func @cnn_kernel(%arg0: i32, %arg1: memref<32x768xf32, #tpu.memory_space<vmem>>, %arg2: memref<768x128xf32, #tpu.memory_space<vmem>>, %arg3: memref<1x128xf32, #tpu.memory_space<vmem>>, %arg4: memref<128x128xf32, #tpu.memory_space<vmem>>, %arg5: memref<1x128xf32, #tpu.memory_space<vmem>>, %arg6: memref<32x128xf32, #tpu.memory_space<vmem>>) attributes {dimension_semantics = [#tpu.dimension_semantics<parallel>], iteration_bounds = array<i64: 4>, scalar_prefetch = 0 : i64, scratch_operands = 0 : i64, tpu.core_type = #tpu.core_type<tc>, window_params = [{transform_indices = @transform_0, window_bounds = array<i64: 32, 768>}, {pipeline_mode = #tpu.pipeline_mode<synchronous>, transform_indices = @transform_1, window_bounds = array<i64: 768, 128>}, {pipeline_mode = #tpu.pipeline_mode<synchronous>, transform_indices = @transform_2, window_bounds = array<i64: 1, 128>}, {pipeline_mode = #tpu.pipeline_mode<synchronous>, transform_indices = @transform_3, window_bounds = array<i64: 128, 128>}, {pipeline_mode = #tpu.pipeline_mode<synchronous>, transform_indices = @transform_4, window_bounds = array<i64: 1, 128>}, {transform_indices = @transform_5, window_bounds = array<i64: 32, 128>}]} {
    %c0 = arith.constant 0 : index
    %c0_0 = arith.constant 0 : index
    %0 = vector.load %arg1[%c0, %c0_0] : memref<32x768xf32, #tpu.memory_space<vmem>>, vector<32x768xf32>
    %cst = arith.constant 9.99999997E-7 : f32
    %cst_1 = arith.constant 0.999998986 : f32
    %1 = vector.broadcast %cst : f32 to vector<32x768xf32>
    %2 = arith.maximumf %1, %0 : vector<32x768xf32>
    %3 = vector.broadcast %cst_1 : f32 to vector<32x768xf32>
    %4 = arith.minimumf %3, %2 : vector<32x768xf32>
    %5 = math.log %4 : vector<32x768xf32>
    %cst_2 = arith.constant 0.000000e+00 : f32
    %6 = vector.broadcast %cst_2 : f32 to vector<32x768xf32>
    %7 = arith.subf %6, %4 : vector<32x768xf32>
    %8 = math.log1p %7 : vector<32x768xf32>
    %9 = arith.subf %5, %8 : vector<32x768xf32>
    %c0_3 = arith.constant 0 : index
    %c0_4 = arith.constant 0 : index
    %10 = vector.load %arg2[%c0_3, %c0_4] : memref<768x128xf32, #tpu.memory_space<vmem>>, vector<768x128xf32>
    %cst_5 = arith.constant dense<0.000000e+00> : vector<32x128xf32>
    %11 = tpu.matmul %9, %10, %cst_5 {dimension_numbers = #tpu.dot_dimension_numbers<[1], [0], [0], [1], [0, 0, 1, 1], [], []>} : vector<32x768xf32>, vector<768x128xf32>, vector<32x128xf32> -> vector<32x128xf32>
    %c0_6 = arith.constant 0 : index
    %c0_7 = arith.constant 0 : index
    %12 = vector.load %arg3[%c0_6, %c0_7] : memref<1x128xf32, #tpu.memory_space<vmem>>, vector<1x128xf32>
    %13 = vector.broadcast %12 : vector<1x128xf32> to vector<32x128xf32>
    %14 = arith.addf %11, %13 : vector<32x128xf32>
    %cst_8 = arith.constant 0.000000e+00 : f32
    %15 = vector.broadcast %cst_8 : f32 to vector<32x128xf32>
    %16 = arith.maximumf %14, %15 : vector<32x128xf32>
    %c0_9 = arith.constant 0 : index
    %c0_10 = arith.constant 0 : index
    %17 = vector.load %arg4[%c0_9, %c0_10] : memref<128x128xf32, #tpu.memory_space<vmem>>, vector<128x128xf32>
    %cst_11 = arith.constant dense<0.000000e+00> : vector<32x128xf32>
    %18 = tpu.matmul %16, %17, %cst_11 {dimension_numbers = #tpu.dot_dimension_numbers<[1], [0], [0], [1], [0, 0, 1, 1], [], []>} : vector<32x128xf32>, vector<128x128xf32>, vector<32x128xf32> -> vector<32x128xf32>
    %c0_12 = arith.constant 0 : index
    %c0_13 = arith.constant 0 : index
    %19 = vector.load %arg5[%c0_12, %c0_13] : memref<1x128xf32, #tpu.memory_space<vmem>>, vector<1x128xf32>
    %20 = vector.broadcast %19 : vector<1x128xf32> to vector<32x128xf32>
    %21 = arith.addf %18, %20 : vector<32x128xf32>
    %22 = arith.negf %21 : vector<32x128xf32>
    %23 = math.exp %22 : vector<32x128xf32>
    %cst_14 = arith.constant 1.000000e+00 : f32
    %24 = vector.broadcast %cst_14 : f32 to vector<32x128xf32>
    %25 = arith.addf %24, %23 : vector<32x128xf32>
    %26 = arith.divf %24, %25 : vector<32x128xf32>
    %c0_15 = arith.constant 0 : index
    %c0_16 = arith.constant 0 : index
    %27 = vector.load %arg6[%c0_15, %c0_16] : memref<32x128xf32, #tpu.memory_space<vmem>>, vector<32x128xf32>
    tpu.vector_store %arg6[%c0_15, %c0_16], %26 {strides = array<i32>} : memref<32x128xf32, #tpu.memory_space<vmem>>, vector<32x128xf32>,
    return
  }
  func.func @transform_0(%arg0: i32) -> (i32, i32) {
    %c0_i32 = arith.constant 0 : i32
    %c0_i32_0 = arith.constant 0 : i32
    return %arg0, %c0_i32 : i32, i32
  }
  func.func @transform_1(%arg0: i32) -> (i32, i32) {
    %c0_i32 = arith.constant 0 : i32
    %c0_i32_0 = arith.constant 0 : i32
    %c0_i32_1 = arith.constant 0 : i32
    return %c0_i32, %c0_i32_0 : i32, i32
  }
  func.func @transform_2(%arg0: i32) -> (i32, i32) {
    %c0_i32 = arith.constant 0 : i32
    %c0_i32_0 = arith.constant 0 : i32
    %c0_i32_1 = arith.constant 0 : i32
    return %c0_i32, %c0_i32_0 : i32, i32
  }
  func.func @transform_3(%arg0: i32) -> (i32, i32) {
    %c0_i32 = arith.constant 0 : i32
    %c0_i32_0 = arith.constant 0 : i32
    %c0_i32_1 = arith.constant 0 : i32
    return %c0_i32, %c0_i32_0 : i32, i32
  }
  func.func @transform_4(%arg0: i32) -> (i32, i32) {
    %c0_i32 = arith.constant 0 : i32
    %c0_i32_0 = arith.constant 0 : i32
    %c0_i32_1 = arith.constant 0 : i32
    return %c0_i32, %c0_i32_0 : i32, i32
  }
  func.func @transform_5(%arg0: i32) -> (i32, i32) {
    %c0_i32 = arith.constant 0 : i32
    %c0_i32_0 = arith.constant 0 : i32
    return %arg0, %c0_i32 : i32, i32
  }
}

</mosaic_0001>

<llo_original>
// kernel: tpu_custom_call.1
$region0: #{tpu_custom_call.1}
  #allocation0 [shape = 'u32[]', space=smem, size = 0x4, offset = 0x4, fixed_abs, tag = 'smem constant byte address 0x4 - core index']
  #allocation1 [shape = 'u32[144,128]{1,0:T(1,128)}', space=vmem, size = 0x12000, scoped, tag = 'internal scratch']
  %s0 = inlined_call_operand.hbm [shape: f32[128,768], index: 0, kind: input, shape index: {}]
  %s1 = inlined_call_operand.hbm [shape: f32[768,128], index: 1, kind: input, shape index: {}]
  %s2 = inlined_call_operand.vmem [shape: f32[1,128], index: 2, kind: input, shape index: {}]
  %s3 = inlined_call_operand.hbm [shape: f32[128,128], index: 3, kind: input, shape index: {}]
  %s4 = inlined_call_operand.vmem [shape: f32[1,128], index: 4, kind: input, shape index: {}]
  %s5 = inlined_call_operand.hbm [shape: f32[128,128], index: 5, kind: output, shape index: {}]
  %s6 = sld [smem:[#allocation0]]
  $region65: #{tpu_custom_call.1} parent=0
    _
  %s8 = ssub.s32 1, %s6
  %s9 = scalar_select 0, %s8, %s6
  $region1: #{tpu_custom_call.1} parent=0
    #allocation2 [shape = 'u8[196608]{0}', space=vmem, size = 0x30000, scoped, tag = 'input window, operand 0']
    #allocation3 [shape = 's32[2]{0}', space=sflag, size = 0x8, scoped, tag = 'scoped memory for tpu_custom_call.1']
    #allocation4 [shape = 's32[2]{0}', space=sflag, size = 0x8, scoped, tag = 'scoped memory for tpu_custom_call.1']
    #allocation5 [shape = 'u8[393216]{0}', space=vmem, size = 0x60000, scoped, tag = 'input window, operand 1, single buffered']
    #allocation6 [shape = 's32[1]{0}', space=sflag, size = 0x4, scoped, tag = 'scoped memory for tpu_custom_call.1']
    #allocation7 [shape = 'u8[65536]{0}', space=vmem, size = 0x10000, scoped, tag = 'input window, operand 3, single buffered']
    #allocation8 [shape = 'u8[32768]{0}', space=vmem, size = 0x8000, scoped, tag = 'output window, operand 0']
    %10 = vsyncpa [#allocation3], 0
    %s11 = scalar_lea.sflag [#allocation3], 1
    %12 = vsyncpa %s11, 0
    %13 = vsyncpa [#allocation6], 0
    %14 = vsyncpa [#allocation4], 0
    %s15 = scalar_lea.sflag [#allocation4], 1
    %16 = vsyncpa %s15, 0
    loop: start=0, step=1, limit=6
    $region2: #{tpu_custom_call.1} parent=1 // loop_pre_header
      _
    $region3: #{tpu_custom_call.1} parent=1 // loop_header
      %s18 = sphi 0, %s22
      %p19 = scmp.ge.s32.totalorder %s18, 6
      %s28 = sphi 0, %s30
      %s31 = sphi 0, %s28
      %s32 = sphi 0, %s31
      %s48 = sphi 0, %s32
      %s52 = sphi 0, %s52
      %s54 = sphi 0, %s52
      %s55 = sphi 0, %s54
      %s69 = sphi 0, %s55
      %s73 = sphi 0, %s73
      %s75 = sphi 0, %s73
      %s76 = sphi 0, %s75
      %s90 = sphi 0, %s76
      %s94 = sphi 0, %s94
      %s96 = sphi 0, %s94
      %s97 = sphi 0, %s96
      %s111 = sphi 0, %s97
      %s115 = sphi 0, %s115
      %s117 = sphi 0, %s115
      %s118 = sphi 0, %s117
      %s132 = sphi 0, %s118
      %s138 = sphi 0, %s140
      %s141 = sphi 0, %s138
      %s142 = sphi 0, %s141
      %s158 = sphi 0, %s142
    $region4: #{tpu_custom_call.1} parent=1 // loop_header_branch
      %21 = sbr.rel (%p19) target = $region8
    $region5: #{tpu_custom_call.1} parent=1 // loop_body
      %s23 = ssub.s32 %s18, 1
      %s24 = ssub.s32 %s18, 2
      %s25 = sadd.s32 %s18, 1
      %s26 = ssub.s32 %s18, %s25
      %p27 = scmp.eq.s32.totalorder %s26, 0
      %s29 = sadd.s32 %s28, 1
      %s30 = scalar_select %p27, %s28, %s29
      %p33 = pneg %p27
      %p34 = scmp.eq.s32.totalorder %s18, 3
      %p35 = por %p33, %p34
      %p36 = scmp.ne.s32.totalorder %s28, %s31
      %p37 = scmp.eq.s32.totalorder %s18, 0
      %p38 = por %p36, %p37
      %p39 = scmp.ne.s32.totalorder %s28, %s31
      %p40 = scmp.eq.s32.totalorder %s23, 3
      %p41 = por %p39, %p40
      %p42 = scmp.ne.s32.totalorder %s31, %s32
      %p43 = scmp.eq.s32.totalorder %s23, 0
      %p44 = por %p42, %p43
      %p45 = scmp.ne.s32.totalorder %s31, %s32
      %p46 = scmp.eq.s32.totalorder %s24, 3
      %p47 = por %p45, %p46
      %p49 = scmp.ne.s32.totalorder %s32, %s48
      %p50 = scmp.eq.s32.totalorder %s24, 0
      %p51 = por %p49, %p50
      %s53 = sadd.s32 %s52, 1
      %p56 = scmp.eq.s32.totalorder %s18, 3
      %p57 = scmp.ne.s32.totalorder %s52, %s54
      %p58 = scmp.eq.s32.totalorder %s18, 0
      %p59 = por %p57, %p58
      %p60 = scmp.ne.s32.totalorder %s52, %s54
      %p61 = scmp.eq.s32.totalorder %s23, 3
      %p62 = por %p60, %p61
      %p63 = scmp.ne.s32.totalorder %s54, %s55
      %p64 = scmp.eq.s32.totalorder %s23, 0
      %p65 = por %p63, %p64
      %p66 = scmp.ne.s32.totalorder %s54, %s55
      %p67 = scmp.eq.s32.totalorder %s24, 3
      %p68 = por %p66, %p67
      %p70 = scmp.ne.s32.totalorder %s55, %s69
      %p71 = scmp.eq.s32.totalorder %s24, 0
      %p72 = por %p70, %p71
      %s74 = sadd.s32 %s73, 1
      %p77 = scmp.eq.s32.totalorder %s18, 3
      %p78 = scmp.ne.s32.totalorder %s73, %s75
      %p79 = scmp.eq.s32.totalorder %s18, 0
      %p80 = por %p78, %p79
      %p81 = scmp.ne.s32.totalorder %s73, %s75
      %p82 = scmp.eq.s32.totalorder %s23, 3
      %p83 = por %p81, %p82
      %p84 = scmp.ne.s32.totalorder %s75, %s76
      %p85 = scmp.eq.s32.totalorder %s23, 0
      %p86 = por %p84, %p85
      %p87 = scmp.ne.s32.totalorder %s75, %s76
      %p88 = scmp.eq.s32.totalorder %s24, 3
      %p89 = por %p87, %p88
      %p91 = scmp.ne.s32.totalorder %s76, %s90
      %p92 = scmp.eq.s32.totalorder %s24, 0
      %p93 = por %p91, %p92
      %s95 = sadd.s32 %s94, 1
      %p98 = scmp.eq.s32.totalorder %s18, 3
      %p99 = scmp.ne.s32.totalorder %s94, %s96
      %p100 = scmp.eq.s32.totalorder %s18, 0
      %p101 = por %p99, %p100
      %p102 = scmp.ne.s32.totalorder %s94, %s96
      %p103 = scmp.eq.s32.totalorder %s23, 3
      %p104 = por %p102, %p103
      %p105 = scmp.ne.s32.totalorder %s96, %s97
      %p106 = scmp.eq.s32.totalorder %s23, 0
      %p107 = por %p105, %p106
      %p108 = scmp.ne.s32.totalorder %s96, %s97
      %p109 = scmp.eq.s32.totalorder %s24, 3
      %p110 = por %p108, %p109
      %p112 = scmp.ne.s32.totalorder %s97, %s111
      %p113 = scmp.eq.s32.totalorder %s24, 0
      %p114 = por %p112, %p113
      %s116 = sadd.s32 %s115, 1
      %p119 = scmp.eq.s32.totalorder %s18, 3
      %p120 = scmp.ne.s32.totalorder %s115, %s117
      %p121 = scmp.eq.s32.totalorder %s18, 0
      %p122 = por %p120, %p121
      %p123 = scmp.ne.s32.totalorder %s115, %s117
      %p124 = scmp.eq.s32.totalorder %s23, 3
      %p125 = por %p123, %p124
      %p126 = scmp.ne.s32.totalorder %s117, %s118
      %p127 = scmp.eq.s32.totalorder %s23, 0
      %p128 = por %p126, %p127
      %p129 = scmp.ne.s32.totalorder %s117, %s118
      %p130 = scmp.eq.s32.totalorder %s24, 3
      %p131 = por %p129, %p130
      %p133 = scmp.ne.s32.totalorder %s118, %s132
      %p134 = scmp.eq.s32.totalorder %s24, 0
      %p135 = por %p133, %p134
      %s136 = ssub.s32 %s18, %s25
      %p137 = scmp.eq.s32.totalorder %s136, 0
      %s139 = sadd.s32 %s138, 1
      %s140 = scalar_select %p137, %s138, %s139
      %p143 = pneg %p137
      %p144 = scmp.eq.s32.totalorder %s18, 3
      %p145 = por %p143, %p144
      %p146 = scmp.ne.s32.totalorder %s138, %s141
      %p147 = scmp.eq.s32.totalorder %s18, 0
      %p148 = por %p146, %p147
      %p149 = scmp.ne.s32.totalorder %s138, %s141
      %p150 = scmp.eq.s32.totalorder %s23, 3
      %p151 = por %p149, %p150
      %p152 = scmp.ne.s32.totalorder %s141, %s142
      %p153 = scmp.eq.s32.totalorder %s23, 0
      %p154 = por %p152, %p153
      %p155 = scmp.ne.s32.totalorder %s141, %s142
      %p156 = scmp.eq.s32.totalorder %s24, 3
      %p157 = por %p155, %p156
      %p159 = scmp.ne.s32.totalorder %s142, %s158
      %p160 = scmp.eq.s32.totalorder %s24, 0
      %p161 = por %p159, %p160
      %p162 = scmp.le.s32.totalorder 1, %s18
      %p163 = scmp.lt.s32.totalorder %s18, 5
      %p164 = pnand %p162, %p163
      %p165 = pneg %p164
      // Predicated region
      $region9: #{tpu_custom_call.1} parent=5 // pred_check
        _
      $region10: #{tpu_custom_call.1} parent=5 // pred_check_branch
        %167 = sbr.rel (%p164) target = $region12
      $region11: #{tpu_custom_call.1} parent=5 // pred_region
        %s168 = ssub.s32 %s18, 1
        // Predicated region
        $region13: #{tpu_custom_call.1} parent=11 // pred_check
          %p169 = pneg %p65
        $region14: #{tpu_custom_call.1} parent=11 // pred_check_branch
          %171 = sbr.rel (%p169) target = $region16
        $region15: #{tpu_custom_call.1} parent=11 // pred_region
          %s173 = ssub.s32 12288, 12288
          %174 = vsyncadd [#allocation6], %s173
          %s175 = sshll.u32 [#allocation5], 4
          %s176 = int_to_ptr.vmem [resolvable:$true] %s175
          %181 = dma.hbm_to_vmem [thread:$0]  %s1, 12288, %s176, [#allocation6], 128, 128, 8
        $region16: #{tpu_custom_call.1} parent=11 // pred_fallthru
          _
        // Predicated region
        $region17: #{tpu_custom_call.1} parent=11 // pred_check
          %p182 = pneg %p86
        $region18: #{tpu_custom_call.1} parent=11 // pred_check_branch
          %184 = sbr.rel (%p182) target = $region20
        $region19: #{tpu_custom_call.1} parent=11 // pred_region
          _
        $region20: #{tpu_custom_call.1} parent=11 // pred_fallthru
          _
        // Predicated region
        $region21: #{tpu_custom_call.1} parent=11 // pred_check
          %p185 = pneg %p107
        $region22: #{tpu_custom_call.1} parent=11 // pred_check_branch
          %187 = sbr.rel (%p185) target = $region24
        $region23: #{tpu_custom_call.1} parent=11 // pred_region
          %s189 = ssub.s32 2048, 2048
          %190 = vsyncadd [#allocation6], %s189
          %s191 = sshll.u32 [#allocation7], 4
          %s192 = int_to_ptr.vmem [resolvable:$true] %s191
          %197 = dma.hbm_to_vmem [thread:$0]  %s3, 2048, %s192, [#allocation6], 128, 128, 8
        $region24: #{tpu_custom_call.1} parent=11 // pred_fallthru
          _
        // Predicated region
        $region25: #{tpu_custom_call.1} parent=11 // pred_check
          %p198 = pneg %p128
        $region26: #{tpu_custom_call.1} parent=11 // pred_check_branch
          %200 = sbr.rel (%p198) target = $region28
        $region27: #{tpu_custom_call.1} parent=11 // pred_region
          _
        $region28: #{tpu_custom_call.1} parent=11 // pred_fallthru
          _
      $region12: #{tpu_custom_call.1} parent=5 // pred_fallthru
        _
      %p201 = scmp.lt.s32.totalorder %s18, 4
      // Predicated region
      $region29: #{tpu_custom_call.1} parent=5 // pred_check
        %p202 = pneg %p201
      $region30: #{tpu_custom_call.1} parent=5 // pred_check_branch
        %204 = sbr.rel (%p202) target = $region32
      $region31: #{tpu_custom_call.1} parent=5 // pred_region
        // Predicated region
        $region33: #{tpu_custom_call.1} parent=31 // pred_check
          %p205 = pneg %p38
        $region34: #{tpu_custom_call.1} parent=31 // pred_check_branch
          %207 = sbr.rel (%p205) target = $region36
        $region35: #{tpu_custom_call.1} parent=31 // pred_region
          %s208 = sand.u32 %s28, 1
          %s209 = scalar_lea.sflag [#allocation3], %s208
          %s210 = sand.u32 %s28, 1
          %s211 = smul.addr %s210, 192
          %s212 = scalar_lea.vmem [#allocation2], %s211
          %s213 = smul.u32 4, %s18
          %s215 = ssub.s32 3072, 3072
          %216 = vsyncadd %s209, %s215
          %s217 = smul.addr %s213, 6
          %s218 = smul.addr %s217, 128
          %s219 = scalar_lea.hbm %s0, %s218
          %s220 = sshll.u32 %s212, 4
          %s221 = int_to_ptr.vmem [resolvable:$true] %s220
          %226 = dma.hbm_to_vmem [thread:$0]  %s219, 3072, %s221, %s209, 768, 768, 48
        $region36: #{tpu_custom_call.1} parent=31 // pred_fallthru
          _
      $region32: #{tpu_custom_call.1} parent=5 // pred_fallthru
        _
      %p227 = scmp.le.s32.totalorder 1, %s18
      %p228 = scmp.lt.s32.totalorder %s18, 5
      %p229 = pnand %p227, %p228
      %p230 = pneg %p229
      // Predicated region
      $region37: #{tpu_custom_call.1} parent=5 // pred_check
        _
      $region38: #{tpu_custom_call.1} parent=5 // pred_check_branch
        %232 = sbr.rel (%p229) target = $region40
      $region39: #{tpu_custom_call.1} parent=5 // pred_region
        %s233 = ssub.s32 %s18, 1
        %s234 = sand.u32 %s31, 1
        %s235 = scalar_lea.sflag [#allocation3], %s234
        %s236 = sand.u32 %s31, 1
        %s237 = smul.addr %s236, 192
        %s238 = scalar_lea.vmem [#allocation2], %s237
        // Predicated region
        $region41: #{tpu_custom_call.1} parent=39 // pred_check
          %p239 = pneg %p44
        $region42: #{tpu_custom_call.1} parent=39 // pred_check_branch
          %241 = sbr.rel (%p239) target = $region44
        $region43: #{tpu_custom_call.1} parent=39 // pred_region
          %242 = dma.done %s235, 3072
        $region44: #{tpu_custom_call.1} parent=39 // pred_fallthru
          _
        // Predicated region
        $region45: #{tpu_custom_call.1} parent=39 // pred_check
          %p243 = pneg %p65
        $region46: #{tpu_custom_call.1} parent=39 // pred_check_branch
          %245 = sbr.rel (%p243) target = $region48
        $region47: #{tpu_custom_call.1} parent=39 // pred_region
          %246 = dma.done [#allocation6], 12288
        $region48: #{tpu_custom_call.1} parent=39 // pred_fallthru
          _
        // Predicated region
        $region49: #{tpu_custom_call.1} parent=39 // pred_check
          %p247 = pneg %p107
        $region50: #{tpu_custom_call.1} parent=39 // pred_check_branch
          %249 = sbr.rel (%p247) target = $region52
        $region51: #{tpu_custom_call.1} parent=39 // pred_region
          %250 = dma.done [#allocation6], 2048
        $region52: #{tpu_custom_call.1} parent=39 // pred_fallthru
          _
        %s251 = sand.u32 %s31, 1
        %s252 = scalar_lea.sflag [#allocation3], %s251
        %s253 = sand.u32 %s31, 1
        %s254 = smul.addr %s253, 192
        %s255 = scalar_lea.vmem [#allocation2], %s254
        %p256 = pneg %p44
        %p257 = pneg %p41
        %p258 = pneg %p65
        %p259 = pneg %p62
        %p260 = pneg %p86
        %p261 = pneg %p83
        %p262 = pneg %p107
        %p263 = pneg %p104
        %p264 = pneg %p128
        %p265 = pneg %p125
        %p266 = pneg %p154
        %p267 = pneg %p151
        %s268 = sand.u32 %s141, 1
        %s269 = scalar_lea.sflag [#allocation4], %s268
        %s270 = sand.u32 %s141, 1
        %s271 = smul.addr %s270, 32
        %s272 = scalar_lea.vmem [#allocation8], %s271
        %s273 = smul.u32 4, %s23
        %s274 = smul.u32 4, %s23
        %v275 = vld [vmem:[%s238] sm:$0xff]
        %v276 = vld [vmem:[%s238 + $0x8] sm:$0xff]
        %v277 = vld [vmem:[%s238 + $0x10] sm:$0xff]
        %v278 = vld [vmem:[%s238 + $0x18] sm:$0xff]
        %v279 = vld [vmem:[%s238 + $0x20] sm:$0xff]
        %v280 = vld [vmem:[%s238 + $0x28] sm:$0xff]
        %v281 = vld [vmem:[%s238 + $0x30] sm:$0xff]
        %v282 = vld [vmem:[%s238 + $0x38] sm:$0xff]
        %v283 = vld [vmem:[%s238 + $0x40] sm:$0xff]
        %v284 = vld [vmem:[%s238 + $0x48] sm:$0xff]
        %v285 = vld [vmem:[%s238 + $0x50] sm:$0xff]
        %v286 = vld [vmem:[%s238 + $0x58] sm:$0xff]
        %v287 = vld [vmem:[%s238 + $0x60] sm:$0xff]
        %v288 = vld [vmem:[%s238 + $0x68] sm:$0xff]
        %v289 = vld [vmem:[%s238 + $0x70] sm:$0xff]
        %v290 = vld [vmem:[%s238 + $0x78] sm:$0xff]
        %v291 = vld [vmem:[%s238 + $0x80] sm:$0xff]
        %v292 = vld [vmem:[%s238 + $0x88] sm:$0xff]
        %v293 = vld [vmem:[%s238 + $0x90] sm:$0xff]
        %v294 = vld [vmem:[%s238 + $0x98] sm:$0xff]
        %v295 = vld [vmem:[%s238 + $0xa0] sm:$0xff]
        %v296 = vld [vmem:[%s238 + $0xa8] sm:$0xff]
        %v297 = vld [vmem:[%s238 + $0xb0] sm:$0xff]
        %v298 = vld [vmem:[%s238 + $0xb8] sm:$0xff]
        %v299 = vmax.f32 %v275, 1e-06
        %v300 = vmax.f32 %v276, 1e-06
        %v301 = vmax.f32 %v277, 1e-06
        %v302 = vmax.f32 %v278, 1e-06
        %v303 = vmax.f32 %v279, 1e-06
        %v304 = vmax.f32 %v280, 1e-06
        %v305 = vmax.f32 %v281, 1e-06
        %v306 = vmax.f32 %v282, 1e-06
        %v307 = vmax.f32 %v283, 1e-06
        %v308 = vmax.f32 %v284, 1e-06
        %v309 = vmax.f32 %v285, 1e-06
        %v310 = vmax.f32 %v286, 1e-06
        %v311 = vmax.f32 %v287, 1e-06
        %v312 = vmax.f32 %v288, 1e-06
        %v313 = vmax.f32 %v289, 1e-06
        %v314 = vmax.f32 %v290, 1e-06
        %v315 = vmax.f32 %v291, 1e-06
        %v316 = vmax.f32 %v292, 1e-06
        %v317 = vmax.f32 %v293, 1e-06
        %v318 = vmax.f32 %v294, 1e-06
        %v319 = vmax.f32 %v295, 1e-06
        %v320 = vmax.f32 %v296, 1e-06
        %v321 = vmax.f32 %v297, 1e-06
        %v322 = vmax.f32 %v298, 1e-06
        %v323 = vmin.f32 %v299, 0.999999
        %v324 = vmin.f32 %v300, 0.999999
        %v325 = vmin.f32 %v301, 0.999999
        %v326 = vmin.f32 %v302, 0.999999
        %v327 = vmin.f32 %v303, 0.999999
        %v328 = vmin.f32 %v304, 0.999999
        %v329 = vmin.f32 %v305, 0.999999
        %v330 = vmin.f32 %v306, 0.999999
        %v331 = vmin.f32 %v307, 0.999999
        %v332 = vmin.f32 %v308, 0.999999
        %v333 = vmin.f32 %v309, 0.999999
        %v334 = vmin.f32 %v310, 0.999999
        %v335 = vmin.f32 %v311, 0.999999
        %v336 = vmin.f32 %v312, 0.999999
        %v337 = vmin.f32 %v313, 0.999999
        %v338 = vmin.f32 %v314, 0.999999
        %v339 = vmin.f32 %v315, 0.999999
        %v340 = vmin.f32 %v316, 0.999999
        %v341 = vmin.f32 %v317, 0.999999
        %v342 = vmin.f32 %v318, 0.999999
        %v343 = vmin.f32 %v319, 0.999999
        %v344 = vmin.f32 %v320, 0.999999
        %v345 = vmin.f32 %v321, 0.999999
        %v346 = vmin.f32 %v322, 0.999999
        %v347 = vlog2.pop %v323
        %v348 = vmul.f32 %v347, 0.6931472
        %v349 = vlog2.pop %v324
        %v350 = vmul.f32 %v349, 0.6931472
        %v351 = vlog2.pop %v325
        %v352 = vmul.f32 %v351, 0.6931472
        %v353 = vlog2.pop %v326
        %v354 = vmul.f32 %v353, 0.6931472
        %v355 = vlog2.pop %v327
        %v356 = vmul.f32 %v355, 0.6931472
        %v357 = vlog2.pop %v328
        %v358 = vmul.f32 %v357, 0.6931472
        %v359 = vlog2.pop %v329
        %v360 = vmul.f32 %v359, 0.6931472
        %v361 = vlog2.pop %v330
        %v362 = vmul.f32 %v361, 0.6931472
        %v363 = vlog2.pop %v331
        %v364 = vmul.f32 %v363, 0.6931472
        %v365 = vlog2.pop %v332
        %v366 = vmul.f32 %v365, 0.6931472
        %v367 = vlog2.pop %v333
        %v368 = vmul.f32 %v367, 0.6931472
        %v369 = vlog2.pop %v334
        %v370 = vmul.f32 %v369, 0.6931472
        %v371 = vlog2.pop %v335
        %v372 = vmul.f32 %v371, 0.6931472
        %v373 = vlog2.pop %v336
        %v374 = vmul.f32 %v373, 0.6931472
        %v375 = vlog2.pop %v337
        %v376 = vmul.f32 %v375, 0.6931472
        %v377 = vlog2.pop %v338
        %v378 = vmul.f32 %v377, 0.6931472
        %v379 = vlog2.pop %v339
        %v380 = vmul.f32 %v379, 0.6931472
        %v381 = vlog2.pop %v340
        %v382 = vmul.f32 %v381, 0.6931472
        %v383 = vlog2.pop %v341
        %v384 = vmul.f32 %v383, 0.6931472
        %v385 = vlog2.pop %v342
        %v386 = vmul.f32 %v385, 0.6931472
        %v387 = vlog2.pop %v343
        %v388 = vmul.f32 %v387, 0.6931472
        %v389 = vlog2.pop %v344
        %v390 = vmul.f32 %v389, 0.6931472
        %v391 = vlog2.pop %v345
        %v392 = vmul.f32 %v391, 0.6931472
        %v393 = vlog2.pop %v346
        %v394 = vmul.f32 %v393, 0.6931472
        %v395 = vsub.f32 0.0, %v323
        %v396 = vsub.f32 0.0, %v324
        %v397 = vsub.f32 0.0, %v325
        %v398 = vsub.f32 0.0, %v326
        %v399 = vsub.f32 0.0, %v327
        %v400 = vsub.f32 0.0, %v328
        %v401 = vsub.f32 0.0, %v329
        %v402 = vsub.f32 0.0, %v330
        %v403 = vsub.f32 0.0, %v331
        %v404 = vsub.f32 0.0, %v332
        %v405 = vsub.f32 0.0, %v333
        %v406 = vsub.f32 0.0, %v334
        %v407 = vsub.f32 0.0, %v335
        %v408 = vsub.f32 0.0, %v336
        %v409 = vsub.f32 0.0, %v337
        %v410 = vsub.f32 0.0, %v338
        %v411 = vsub.f32 0.0, %v339
        %v412 = vsub.f32 0.0, %v340
        %v413 = vsub.f32 0.0, %v341
        %v414 = vsub.f32 0.0, %v342
        %v415 = vsub.f32 0.0, %v343
        %v416 = vsub.f32 0.0, %v344
        %v417 = vsub.f32 0.0, %v345
        %v418 = vsub.f32 0.0, %v346
        %v419 = vadd.f32 %v395, 1.0
        %v420 = vlog2.pop %v419
        %v421 = vmul.f32 %v420, 0.6931472
        %v422 = vmul.f32 -0.5, %v395
        %v423 = vadd.f32 %v422, 1.0
        %v424 = vmul.f32 %v423, %v395
        %v425 = vand.u32 2147483647, %v395
        %vm426 = vcmp.lt.f32.partialorder %v425, 0.0004427343
        %v427 = vsel %vm426, %v424, %v421
        %v428 = vadd.f32 %v396, 1.0
        %v429 = vlog2.pop %v428
        %v430 = vmul.f32 %v429, 0.6931472
        %v431 = vmul.f32 -0.5, %v396
        %v432 = vadd.f32 %v431, 1.0
        %v433 = vmul.f32 %v432, %v396
        %v434 = vand.u32 2147483647, %v396
        %vm435 = vcmp.lt.f32.partialorder %v434, 0.0004427343
        %v436 = vsel %vm435, %v433, %v430
        %v437 = vadd.f32 %v397, 1.0
        %v438 = vlog2.pop %v437
        %v439 = vmul.f32 %v438, 0.6931472
        %v440 = vmul.f32 -0.5, %v397
        %v441 = vadd.f32 %v440, 1.0
        %v442 = vmul.f32 %v441, %v397
        %v443 = vand.u32 2147483647, %v397
        %vm444 = vcmp.lt.f32.partialorder %v443, 0.0004427343
        %v445 = vsel %vm444, %v442, %v439
        %v446 = vadd.f32 %v398, 1.0
        %v447 = vlog2.pop %v446
        %v448 = vmul.f32 %v447, 0.6931472
        %v449 = vmul.f32 -0.5, %v398
        %v450 = vadd.f32 %v449, 1.0
        %v451 = vmul.f32 %v450, %v398
        %v452 = vand.u32 2147483647, %v398
        %vm453 = vcmp.lt.f32.partialorder %v452, 0.0004427343
        %v454 = vsel %vm453, %v451, %v448
        %v455 = vadd.f32 %v399, 1.0
        %v456 = vlog2.pop %v455
        %v457 = vmul.f32 %v456, 0.6931472
        %v458 = vmul.f32 -0.5, %v399
        %v459 = vadd.f32 %v458, 1.0
        %v460 = vmul.f32 %v459, %v399
        %v461 = vand.u32 2147483647, %v399
        %vm462 = vcmp.lt.f32.partialorder %v461, 0.0004427343
        %v463 = vsel %vm462, %v460, %v457
        %v464 = vadd.f32 %v400, 1.0
        %v465 = vlog2.pop %v464
        %v466 = vmul.f32 %v465, 0.6931472
        %v467 = vmul.f32 -0.5, %v400
        %v468 = vadd.f32 %v467, 1.0
        %v469 = vmul.f32 %v468, %v400
        %v470 = vand.u32 2147483647, %v400
        %vm471 = vcmp.lt.f32.partialorder %v470, 0.0004427343
        %v472 = vsel %vm471, %v469, %v466
        %v473 = vadd.f32 %v401, 1.0
        %v474 = vlog2.pop %v473
        %v475 = vmul.f32 %v474, 0.6931472
        %v476 = vmul.f32 -0.5, %v401
        %v477 = vadd.f32 %v476, 1.0
        %v478 = vmul.f32 %v477, %v401
        %v479 = vand.u32 2147483647, %v401
        %vm480 = vcmp.lt.f32.partialorder %v479, 0.0004427343
        %v481 = vsel %vm480, %v478, %v475
        %v482 = vadd.f32 %v402, 1.0
        %v483 = vlog2.pop %v482
        %v484 = vmul.f32 %v483, 0.6931472
        %v485 = vmul.f32 -0.5, %v402
        %v486 = vadd.f32 %v485, 1.0
        %v487 = vmul.f32 %v486, %v402
        %v488 = vand.u32 2147483647, %v402
        %vm489 = vcmp.lt.f32.partialorder %v488, 0.0004427343
        %v490 = vsel %vm489, %v487, %v484
        %v491 = vadd.f32 %v403, 1.0
        %v492 = vlog2.pop %v491
        %v493 = vmul.f32 %v492, 0.6931472
        %v494 = vmul.f32 -0.5, %v403
        %v495 = vadd.f32 %v494, 1.0
        %v496 = vmul.f32 %v495, %v403
        %v497 = vand.u32 2147483647, %v403
        %vm498 = vcmp.lt.f32.partialorder %v497, 0.0004427343
        %v499 = vsel %vm498, %v496, %v493
        %v500 = vadd.f32 %v404, 1.0
        %v501 = vlog2.pop %v500
        %v502 = vmul.f32 %v501, 0.6931472
        %v503 = vmul.f32 -0.5, %v404
        %v504 = vadd.f32 %v503, 1.0
        %v505 = vmul.f32 %v504, %v404
        %v506 = vand.u32 2147483647, %v404
        %vm507 = vcmp.lt.f32.partialorder %v506, 0.0004427343
        %v508 = vsel %vm507, %v505, %v502
        %v509 = vadd.f32 %v405, 1.0
        %v510 = vlog2.pop %v509
        %v511 = vmul.f32 %v510, 0.6931472
        %v512 = vmul.f32 -0.5, %v405
        %v513 = vadd.f32 %v512, 1.0
        %v514 = vmul.f32 %v513, %v405
        %v515 = vand.u32 2147483647, %v405
        %vm516 = vcmp.lt.f32.partialorder %v515, 0.0004427343
        %v517 = vsel %vm516, %v514, %v511
        %v518 = vadd.f32 %v406, 1.0
        %v519 = vlog2.pop %v518
        %v520 = vmul.f32 %v519, 0.6931472
        %v521 = vmul.f32 -0.5, %v406
        %v522 = vadd.f32 %v521, 1.0
        %v523 = vmul.f32 %v522, %v406
        %v524 = vand.u32 2147483647, %v406
        %vm525 = vcmp.lt.f32.partialorder %v524, 0.0004427343
        %v526 = vsel %vm525, %v523, %v520
        %v527 = vadd.f32 %v407, 1.0
        %v528 = vlog2.pop %v527
        %v529 = vmul.f32 %v528, 0.6931472
        %v530 = vmul.f32 -0.5, %v407
        %v531 = vadd.f32 %v530, 1.0
        %v532 = vmul.f32 %v531, %v407
        %v533 = vand.u32 2147483647, %v407
        %vm534 = vcmp.lt.f32.partialorder %v533, 0.0004427343
        %v535 = vsel %vm534, %v532, %v529
        %v536 = vadd.f32 %v408, 1.0
        %v537 = vlog2.pop %v536
        %v538 = vmul.f32 %v537, 0.6931472
        %v539 = vmul.f32 -0.5, %v408
        %v540 = vadd.f32 %v539, 1.0
        %v541 = vmul.f32 %v540, %v408
        %v542 = vand.u32 2147483647, %v408
        %vm543 = vcmp.lt.f32.partialorder %v542, 0.0004427343
        %v544 = vsel %vm543, %v541, %v538
        %v545 = vadd.f32 %v409, 1.0
        %v546 = vlog2.pop %v545
        %v547 = vmul.f32 %v546, 0.6931472
        %v548 = vmul.f32 -0.5, %v409
        %v549 = vadd.f32 %v548, 1.0
        %v550 = vmul.f32 %v549, %v409
        %v551 = vand.u32 2147483647, %v409
        %vm552 = vcmp.lt.f32.partialorder %v551, 0.0004427343
        %v553 = vsel %vm552, %v550, %v547
        %v554 = vadd.f32 %v410, 1.0
        %v555 = vlog2.pop %v554
        %v556 = vmul.f32 %v555, 0.6931472
        %v557 = vmul.f32 -0.5, %v410
        %v558 = vadd.f32 %v557, 1.0
        %v559 = vmul.f32 %v558, %v410
        %v560 = vand.u32 2147483647, %v410
        %vm561 = vcmp.lt.f32.partialorder %v560, 0.0004427343
        %v562 = vsel %vm561, %v559, %v556
        %v563 = vadd.f32 %v411, 1.0
        %v564 = vlog2.pop %v563
        %v565 = vmul.f32 %v564, 0.6931472
        %v566 = vmul.f32 -0.5, %v411
        %v567 = vadd.f32 %v566, 1.0
        %v568 = vmul.f32 %v567, %v411
        %v569 = vand.u32 2147483647, %v411
        %vm570 = vcmp.lt.f32.partialorder %v569, 0.0004427343
        %v571 = vsel %vm570, %v568, %v565
        %v572 = vadd.f32 %v412, 1.0
        %v573 = vlog2.pop %v572
        %v574 = vmul.f32 %v573, 0.6931472
        %v575 = vmul.f32 -0.5, %v412
        %v576 = vadd.f32 %v575, 1.0
        %v577 = vmul.f32 %v576, %v412
        %v578 = vand.u32 2147483647, %v412
        %vm579 = vcmp.lt.f32.partialorder %v578, 0.0004427343
        %v580 = vsel %vm579, %v577, %v574
        %v581 = vadd.f32 %v413, 1.0
        %v582 = vlog2.pop %v581
        %v583 = vmul.f32 %v582, 0.6931472
        %v584 = vmul.f32 -0.5, %v413
        %v585 = vadd.f32 %v584, 1.0
        %v586 = vmul.f32 %v585, %v413
        %v587 = vand.u32 2147483647, %v413
        %vm588 = vcmp.lt.f32.partialorder %v587, 0.0004427343
        %v589 = vsel %vm588, %v586, %v583
        %v590 = vadd.f32 %v414, 1.0
        %v591 = vlog2.pop %v590
        %v592 = vmul.f32 %v591, 0.6931472
        %v593 = vmul.f32 -0.5, %v414
        %v594 = vadd.f32 %v593, 1.0
        %v595 = vmul.f32 %v594, %v414
        %v596 = vand.u32 2147483647, %v414
        %vm597 = vcmp.lt.f32.partialorder %v596, 0.0004427343
        %v598 = vsel %vm597, %v595, %v592
        %v599 = vadd.f32 %v415, 1.0
        %v600 = vlog2.pop %v599
        %v601 = vmul.f32 %v600, 0.6931472
        %v602 = vmul.f32 -0.5, %v415
        %v603 = vadd.f32 %v602, 1.0
        %v604 = vmul.f32 %v603, %v415
        %v605 = vand.u32 2147483647, %v415
        %vm606 = vcmp.lt.f32.partialorder %v605, 0.0004427343
        %v607 = vsel %vm606, %v604, %v601
        %v608 = vadd.f32 %v416, 1.0
        %v609 = vlog2.pop %v608
        %v610 = vmul.f32 %v609, 0.6931472
        %v611 = vmul.f32 -0.5, %v416
        %v612 = vadd.f32 %v611, 1.0
        %v613 = vmul.f32 %v612, %v416
        %v614 = vand.u32 2147483647, %v416
        %vm615 = vcmp.lt.f32.partialorder %v614, 0.0004427343
        %v616 = vsel %vm615, %v613, %v610
        %v617 = vadd.f32 %v417, 1.0
        %v618 = vlog2.pop %v617
        %v619 = vmul.f32 %v618, 0.6931472
        %v620 = vmul.f32 -0.5, %v417
        %v621 = vadd.f32 %v620, 1.0
        %v622 = vmul.f32 %v621, %v417
        %v623 = vand.u32 2147483647, %v417
        %vm624 = vcmp.lt.f32.partialorder %v623, 0.0004427343
        %v625 = vsel %vm624, %v622, %v619
        %v626 = vadd.f32 %v418, 1.0
        %v627 = vlog2.pop %v626
        %v628 = vmul.f32 %v627, 0.6931472
        %v629 = vmul.f32 -0.5, %v418
        %v630 = vadd.f32 %v629, 1.0
        %v631 = vmul.f32 %v630, %v418
        %v632 = vand.u32 2147483647, %v418
        %vm633 = vcmp.lt.f32.partialorder %v632, 0.0004427343
        %v634 = vsel %vm633, %v631, %v628
        %v635 = vsub.f32 %v348, %v427
        %v636 = vsub.f32 %v350, %v436
        %v637 = vsub.f32 %v352, %v445
        %v638 = vsub.f32 %v354, %v454
        %v639 = vsub.f32 %v356, %v463
        %v640 = vsub.f32 %v358, %v472
        %v641 = vsub.f32 %v360, %v481
        %v642 = vsub.f32 %v362, %v490
        %v643 = vsub.f32 %v364, %v499
        %v644 = vsub.f32 %v366, %v508
        %v645 = vsub.f32 %v368, %v517
        %v646 = vsub.f32 %v370, %v526
        %v647 = vsub.f32 %v372, %v535
        %v648 = vsub.f32 %v374, %v544
        %v649 = vsub.f32 %v376, %v553
        %v650 = vsub.f32 %v378, %v562
        %v651 = vsub.f32 %v380, %v571
        %v652 = vsub.f32 %v382, %v580
        %v653 = vsub.f32 %v384, %v589
        %v654 = vsub.f32 %v386, %v598
        %v655 = vsub.f32 %v388, %v607
        %v656 = vsub.f32 %v390, %v616
        %v657 = vsub.f32 %v392, %v625
        %v658 = vsub.f32 %v394, %v634
        %v659 = vld [vmem:[#allocation5] sm:$0xff]
        %v660 = vld [vmem:[#allocation5 + $0x8] sm:$0xff]
        %v661 = vld [vmem:[#allocation5 + $0x10] sm:$0xff]
        %v662 = vld [vmem:[#allocation5 + $0x18] sm:$0xff]
        %v663 = vld [vmem:[#allocation5 + $0x20] sm:$0xff]
        %v664 = vld [vmem:[#allocation5 + $0x28] sm:$0xff]
        %v665 = vld [vmem:[#allocation5 + $0x30] sm:$0xff]
        %v666 = vld [vmem:[#allocation5 + $0x38] sm:$0xff]
        %v667 = vld [vmem:[#allocation5 + $0x40] sm:$0xff]
        %v668 = vld [vmem:[#allocation5 + $0x48] sm:$0xff]
        %v669 = vld [vmem:[#allocation5 + $0x50] sm:$0xff]
        %v670 = vld [vmem:[#allocation5 + $0x58] sm:$0xff]
        %v671 = vld [vmem:[#allocation5 + $0x60] sm:$0xff]
        %v672 = vld [vmem:[#allocation5 + $0x68] sm:$0xff]
        %v673 = vld [vmem:[#allocation5 + $0x70] sm:$0xff]
        %v674 = vld [vmem:[#allocation5 + $0x78] sm:$0xff]
        %v675 = vld [vmem:[#allocation5 + $0x80] sm:$0xff]
        %v676 = vld [vmem:[#allocation5 + $0x88] sm:$0xff]
        %v677 = vld [vmem:[#allocation5 + $0x90] sm:$0xff]
        %v678 = vld [vmem:[#allocation5 + $0x98] sm:$0xff]
        %v679 = vld [vmem:[#allocation5 + $0xa0] sm:$0xff]
        %v680 = vld [vmem:[#allocation5 + $0xa8] sm:$0xff]
        %v681 = vld [vmem:[#allocation5 + $0xb0] sm:$0xff]
        %v682 = vld [vmem:[#allocation5 + $0xb8] sm:$0xff]
        %v683 = vld [vmem:[#allocation5 + $0xc0] sm:$0xff]
        %v684 = vld [vmem:[#allocation5 + $0xc8] sm:$0xff]
        %v685 = vld [vmem:[#allocation5 + $0xd0] sm:$0xff]
        %v686 = vld [vmem:[#allocation5 + $0xd8] sm:$0xff]
        %v687 = vld [vmem:[#allocation5 + $0xe0] sm:$0xff]
        %v688 = vld [vmem:[#allocation5 + $0xe8] sm:$0xff]
        %v689 = vld [vmem:[#allocation5 + $0xf0] sm:$0xff]
        %v690 = vld [vmem:[#allocation5 + $0xf8] sm:$0xff]
        %v691 = vld [vmem:[#allocation5 + $0x100] sm:$0xff]
        %v692 = vld [vmem:[#allocation5 + $0x108] sm:$0xff]
        %v693 = vld [vmem:[#allocation5 + $0x110] sm:$0xff]
        %v694 = vld [vmem:[#allocation5 + $0x118] sm:$0xff]
        %v695 = vld [vmem:[#allocation5 + $0x120] sm:$0xff]
        %v696 = vld [vmem:[#allocation5 + $0x128] sm:$0xff]
        %v697 = vld [vmem:[#allocation5 + $0x130] sm:$0xff]
        %v698 = vld [vmem:[#allocation5 + $0x138] sm:$0xff]
        %v699 = vld [vmem:[#allocation5 + $0x140] sm:$0xff]
        %v700 = vld [vmem:[#allocation5 + $0x148] sm:$0xff]
        %v701 = vld [vmem:[#allocation5 + $0x150] sm:$0xff]
        %v702 = vld [vmem:[#allocation5 + $0x158] sm:$0xff]
        %v703 = vld [vmem:[#allocation5 + $0x160] sm:$0xff]
        %v704 = vld [vmem:[#allocation5 + $0x168] sm:$0xff]
        %v705 = vld [vmem:[#allocation5 + $0x170] sm:$0xff]
        %v706 = vld [vmem:[#allocation5 + $0x178] sm:$0xff]
        %v707 = vld [vmem:[#allocation5 + $0x180] sm:$0xff]
        %v708 = vld [vmem:[#allocation5 + $0x188] sm:$0xff]
        %v709 = vld [vmem:[#allocation5 + $0x190] sm:$0xff]
        %v710 = vld [vmem:[#allocation5 + $0x198] sm:$0xff]
        %v711 = vld [vmem:[#allocation5 + $0x1a0] sm:$0xff]
        %v712 = vld [vmem:[#allocation5 + $0x1a8] sm:$0xff]
        %v713 = vld [vmem:[#allocation5 + $0x1b0] sm:$0xff]
        %v714 = vld [vmem:[#allocation5 + $0x1b8] sm:$0xff]
        %v715 = vld [vmem:[#allocation5 + $0x1c0] sm:$0xff]
        %v716 = vld [vmem:[#allocation5 + $0x1c8] sm:$0xff]
        %v717 = vld [vmem:[#allocation5 + $0x1d0] sm:$0xff]
        %v718 = vld [vmem:[#allocation5 + $0x1d8] sm:$0xff]
        %v719 = vld [vmem:[#allocation5 + $0x1e0] sm:$0xff]
        %v720 = vld [vmem:[#allocation5 + $0x1e8] sm:$0xff]
        %v721 = vld [vmem:[#allocation5 + $0x1f0] sm:$0xff]
        %v722 = vld [vmem:[#allocation5 + $0x1f8] sm:$0xff]
        %v723 = vld [vmem:[#allocation5 + $0x200] sm:$0xff]
        %v724 = vld [vmem:[#allocation5 + $0x208] sm:$0xff]
        %v725 = vld [vmem:[#allocation5 + $0x210] sm:$0xff]
        %v726 = vld [vmem:[#allocation5 + $0x218] sm:$0xff]
        %v727 = vld [vmem:[#allocation5 + $0x220] sm:$0xff]
        %v728 = vld [vmem:[#allocation5 + $0x228] sm:$0xff]
        %v729 = vld [vmem:[#allocation5 + $0x230] sm:$0xff]
        %v730 = vld [vmem:[#allocation5 + $0x238] sm:$0xff]
        %v731 = vld [vmem:[#allocation5 + $0x240] sm:$0xff]
        %v732 = vld [vmem:[#allocation5 + $0x248] sm:$0xff]
        %v733 = vld [vmem:[#allocation5 + $0x250] sm:$0xff]
        %v734 = vld [vmem:[#allocation5 + $0x258] sm:$0xff]
        %v735 = vld [vmem:[#allocation5 + $0x260] sm:$0xff]
        %v736 = vld [vmem:[#allocation5 + $0x268] sm:$0xff]
        %v737 = vld [vmem:[#allocation5 + $0x270] sm:$0xff]
        %v738 = vld [vmem:[#allocation5 + $0x278] sm:$0xff]
        %v739 = vld [vmem:[#allocation5 + $0x280] sm:$0xff]
        %v740 = vld [vmem:[#allocation5 + $0x288] sm:$0xff]
        %v741 = vld [vmem:[#allocation5 + $0x290] sm:$0xff]
        %v742 = vld [vmem:[#allocation5 + $0x298] sm:$0xff]
        %v743 = vld [vmem:[#allocation5 + $0x2a0] sm:$0xff]
        %v744 = vld [vmem:[#allocation5 + $0x2a8] sm:$0xff]
        %v745 = vld [vmem:[#allocation5 + $0x2b0] sm:$0xff]
        %v746 = vld [vmem:[#allocation5 + $0x2b8] sm:$0xff]
        %v747 = vld [vmem:[#allocation5 + $0x2c0] sm:$0xff]
        %v748 = vld [vmem:[#allocation5 + $0x2c8] sm:$0xff]
        %v749 = vld [vmem:[#allocation5 + $0x2d0] sm:$0xff]
        %v750 = vld [vmem:[#allocation5 + $0x2d8] sm:$0xff]
        %v751 = vld [vmem:[#allocation5 + $0x2e0] sm:$0xff]
        %v752 = vld [vmem:[#allocation5 + $0x2e8] sm:$0xff]
        %v753 = vld [vmem:[#allocation5 + $0x2f0] sm:$0xff]
        %v754 = vld [vmem:[#allocation5 + $0x2f8] sm:$0xff]
        %v755 = vld [vmem:[%s2] sm:$0x1]
        %v757 = vlaneseq
        %v758 = vshrl.u32 %v757, 7
        %v759 = vsub.s32 0, %v758
        %v760 = vrot.slane %v755, %v759
        %762 = vmatprep.subr.mxu0 0.0
        %763 = vmatpush1.msra.mxu0 %v674
        %764 = vmatprep.subr.mxu0 0.0
        %765 = vmatpush1.msra.mxu0 %v673
        %766 = vmatprep.subr.mxu0 0.0
        %767 = vmatpush1.msra.mxu0 %v672
        %768 = vmatprep.subr.mxu0 0.0
        %769 = vmatpush1.msra.mxu0 %v671
        %770 = vmatprep.subr.mxu0 0.0
        %771 = vmatpush1.msra.mxu0 %v670
        %772 = vmatprep.subr.mxu0 0.0
        %773 = vmatpush1.msra.mxu0 %v669
        %774 = vmatprep.subr.mxu0 0.0
        %775 = vmatpush1.msra.mxu0 %v668
        %776 = vmatprep.subr.mxu0 0.0
        %777 = vmatpush1.msra.mxu0 %v667
        %778 = vmatprep.subr.mxu0 0.0
        %779 = vmatpush1.msra.mxu0 %v666
        %780 = vmatprep.subr.mxu0 0.0
        %781 = vmatpush1.msra.mxu0 %v665
        %782 = vmatprep.subr.mxu0 0.0
        %783 = vmatpush1.msra.mxu0 %v664
        %784 = vmatprep.subr.mxu0 0.0
        %785 = vmatpush1.msra.mxu0 %v663
        %786 = vmatprep.subr.mxu0 0.0
        %787 = vmatpush1.msra.mxu0 %v662
        %788 = vmatprep.subr.mxu0 0.0
        %789 = vmatpush1.msra.mxu0 %v661
        %790 = vmatprep.subr.mxu0 0.0
        %791 = vmatpush1.msra.mxu0 %v660
        %792 = vmatprep.subr.mxu0 0.0
        %793 = vmatpush1.msra.mxu0 %v659
        %794 = vmatprep.subr.mxu0 0.0
        %795 = vmatpush2.msra.mxu0 %v690
        %796 = vmatprep.subr.mxu0 0.0
        %797 = vmatpush2.msra.mxu0 %v689
        %798 = vmatprep.subr.mxu0 0.0
        %799 = vmatpush2.msra.mxu0 %v688
        %800 = vmatprep.subr.mxu0 0.0
        %801 = vmatpush2.msra.mxu0 %v687
        %802 = vmatprep.subr.mxu0 0.0
        %803 = vmatpush2.msra.mxu0 %v686
        %804 = vmatprep.subr.mxu0 0.0
        %805 = vmatpush2.msra.mxu0 %v685
        %806 = vmatprep.subr.mxu0 0.0
        %807 = vmatpush2.msra.mxu0 %v684
        %808 = vmatprep.subr.mxu0 0.0
        %809 = vmatpush2.msra.mxu0 %v683
        %810 = vmatprep.subr.mxu0 0.0
        %811 = vmatpush2.msra.mxu0 %v682
        %812 = vmatprep.subr.mxu0 0.0
        %813 = vmatpush2.msra.mxu0 %v681
        %814 = vmatprep.subr.mxu0 0.0
        %815 = vmatpush2.msra.mxu0 %v680
        %816 = vmatprep.subr.mxu0 0.0
        %817 = vmatpush2.msra.mxu0 %v679
        %818 = vmatprep.subr.mxu0 0.0
        %819 = vmatpush2.msra.mxu0 %v678
        %820 = vmatprep.subr.mxu0 0.0
        %821 = vmatpush2.msra.mxu0 %v677
        %822 = vmatprep.subr.mxu0 0.0
        %823 = vmatpush2.msra.mxu0 %v676
        %824 = vmatprep.subr.mxu0 0.0
        %825 = vmatpush2.msra.mxu0 %v675
        %826 = vmatprep.mubr.f32.mxu0 %v636
        %827 = vmatmul.mubr.f32.gmra.mxu0 %v635
        %v828 = vpop.f32.mrf.mxu0
        %v829 = vadd.f32 %v760, %v828
        %v830 = vpop.f32.mrf.mxu0
        %831 = vmatprep.mubr.f32.mxu0 %v642
        %832 = vmatmul.mubr.f32.gmra.mxu0 %v641
        %v833 = vpop.f32.mrf.mxu0
        %v834 = vadd.f32 %v760, %v833
        %v835 = vpop.f32.mrf.mxu0
        %836 = vmatprep.mubr.f32.mxu0 %v648
        %837 = vmatmul.mubr.f32.gmra.mxu0 %v647
        %v838 = vpop.f32.mrf.mxu0
        %v839 = vadd.f32 %v760, %v838
        %v840 = vpop.f32.mrf.mxu0
        %841 = vmatprep.mubr.f32.mxu0 %v654
        %842 = vmatmul.mubr.f32.gmra.mxu0 %v653
        %v843 = vpop.f32.mrf.mxu0
        %v844 = vadd.f32 %v760, %v843
        %v845 = vpop.f32.mrf.mxu0
        %846 = vdwg.mxu0
        %847 = vmatprep.subr.mxu0 0.0
        %848 = vmatpush1.msra.mxu0 %v706
        %849 = vmatprep.subr.mxu0 0.0
        %850 = vmatpush1.msra.mxu0 %v705
        %851 = vmatprep.subr.mxu0 0.0
        %852 = vmatpush1.msra.mxu0 %v704
        %853 = vmatprep.subr.mxu0 0.0
        %854 = vmatpush1.msra.mxu0 %v703
        %855 = vmatprep.subr.mxu0 0.0
        %856 = vmatpush1.msra.mxu0 %v702
        %857 = vmatprep.subr.mxu0 0.0
        %858 = vmatpush1.msra.mxu0 %v701
        %859 = vmatprep.subr.mxu0 0.0
        %860 = vmatpush1.msra.mxu0 %v700
        %861 = vmatprep.subr.mxu0 0.0
        %862 = vmatpush1.msra.mxu0 %v699
        %863 = vmatprep.subr.mxu0 0.0
        %864 = vmatpush1.msra.mxu0 %v698
        %865 = vmatprep.subr.mxu0 0.0
        %866 = vmatpush1.msra.mxu0 %v697
        %867 = vmatprep.subr.mxu0 0.0
        %868 = vmatpush1.msra.mxu0 %v696
        %869 = vmatprep.subr.mxu0 0.0
        %870 = vmatpush1.msra.mxu0 %v695
        %871 = vmatprep.subr.mxu0 0.0
        %872 = vmatpush1.msra.mxu0 %v694
        %873 = vmatprep.subr.mxu0 0.0
        %874 = vmatpush1.msra.mxu0 %v693
        %875 = vmatprep.subr.mxu0 0.0
        %876 = vmatpush1.msra.mxu0 %v692
        %877 = vmatprep.subr.mxu0 0.0
        %878 = vmatpush1.msra.mxu0 %v691
        %879 = vmatprep.subr.mxu0 0.0
        %880 = vmatpush2.msra.mxu0 %v722
        %881 = vmatprep.subr.mxu0 0.0
        %882 = vmatpush2.msra.mxu0 %v721
        %883 = vmatprep.subr.mxu0 0.0
        %884 = vmatpush2.msra.mxu0 %v720
        %885 = vmatprep.subr.mxu0 0.0
        %886 = vmatpush2.msra.mxu0 %v719
        %887 = vmatprep.subr.mxu0 0.0
        %888 = vmatpush2.msra.mxu0 %v718
        %889 = vmatprep.subr.mxu0 0.0
        %890 = vmatpush2.msra.mxu0 %v717
        %891 = vmatprep.subr.mxu0 0.0
        %892 = vmatpush2.msra.mxu0 %v716
        %893 = vmatprep.subr.mxu0 0.0
        %894 = vmatpush2.msra.mxu0 %v715
        %895 = vmatprep.subr.mxu0 0.0
        %896 = vmatpush2.msra.mxu0 %v714
        %897 = vmatprep.subr.mxu0 0.0
        %898 = vmatpush2.msra.mxu0 %v713
        %899 = vmatprep.subr.mxu0 0.0
        %900 = vmatpush2.msra.mxu0 %v712
        %901 = vmatprep.subr.mxu0 0.0
        %902 = vmatpush2.msra.mxu0 %v711
        %903 = vmatprep.subr.mxu0 0.0
        %904 = vmatpush2.msra.mxu0 %v710
        %905 = vmatprep.subr.mxu0 0.0
        %906 = vmatpush2.msra.mxu0 %v709
        %907 = vmatprep.subr.mxu0 0.0
        %908 = vmatpush2.msra.mxu0 %v708
        %909 = vmatprep.subr.mxu0 0.0
        %910 = vmatpush2.msra.mxu0 %v707
        %911 = vmatprep.mubr.f32.mxu0 %v638
        %912 = vmatmul.mubr.f32.gmra.mxu0 %v637
        %v913 = vpop.f32.mrf.mxu0
        %v914 = vadd.f32 %v829, %v913
        %v915 = vpop.f32.mrf.mxu0
        %916 = vmatprep.mubr.f32.mxu0 %v644
        %917 = vmatmul.mubr.f32.gmra.mxu0 %v643
        %v918 = vpop.f32.mrf.mxu0
        %v919 = vadd.f32 %v834, %v918
        %v920 = vpop.f32.mrf.mxu0
        %921 = vmatprep.mubr.f32.mxu0 %v650
        %922 = vmatmul.mubr.f32.gmra.mxu0 %v649
        %v923 = vpop.f32.mrf.mxu0
        %v924 = vadd.f32 %v839, %v923
        %v925 = vpop.f32.mrf.mxu0
        %926 = vmatprep.mubr.f32.mxu0 %v656
        %927 = vmatmul.mubr.f32.gmra.mxu0 %v655
        %v928 = vpop.f32.mrf.mxu0
        %v929 = vadd.f32 %v844, %v928
        %v930 = vpop.f32.mrf.mxu0
        %931 = vdwg.mxu0
        %932 = vmatprep.subr.mxu0 0.0
        %933 = vmatpush1.msra.mxu0 %v738
        %934 = vmatprep.subr.mxu0 0.0
        %935 = vmatpush1.msra.mxu0 %v737
        %936 = vmatprep.subr.mxu0 0.0
        %937 = vmatpush1.msra.mxu0 %v736
        %938 = vmatprep.subr.mxu0 0.0
        %939 = vmatpush1.msra.mxu0 %v735
        %940 = vmatprep.subr.mxu0 0.0
        %941 = vmatpush1.msra.mxu0 %v734
        %942 = vmatprep.subr.mxu0 0.0
        %943 = vmatpush1.msra.mxu0 %v733
        %944 = vmatprep.subr.mxu0 0.0
        %945 = vmatpush1.msra.mxu0 %v732
        %946 = vmatprep.subr.mxu0 0.0
        %947 = vmatpush1.msra.mxu0 %v731
        %948 = vmatprep.subr.mxu0 0.0
        %949 = vmatpush1.msra.mxu0 %v730
        %950 = vmatprep.subr.mxu0 0.0
        %951 = vmatpush1.msra.mxu0 %v729
        %952 = vmatprep.subr.mxu0 0.0
        %953 = vmatpush1.msra.mxu0 %v728
        %954 = vmatprep.subr.mxu0 0.0
        %955 = vmatpush1.msra.mxu0 %v727
        %956 = vmatprep.subr.mxu0 0.0
        %957 = vmatpush1.msra.mxu0 %v726
        %958 = vmatprep.subr.mxu0 0.0
        %959 = vmatpush1.msra.mxu0 %v725
        %960 = vmatprep.subr.mxu0 0.0
        %961 = vmatpush1.msra.mxu0 %v724
        %962 = vmatprep.subr.mxu0 0.0
        %963 = vmatpush1.msra.mxu0 %v723
        %964 = vmatprep.subr.mxu0 0.0
        %965 = vmatpush2.msra.mxu0 %v754
        %966 = vmatprep.subr.mxu0 0.0
        %967 = vmatpush2.msra.mxu0 %v753
        %968 = vmatprep.subr.mxu0 0.0
        %969 = vmatpush2.msra.mxu0 %v752
        %970 = vmatprep.subr.mxu0 0.0
        %971 = vmatpush2.msra.mxu0 %v751
        %972 = vmatprep.subr.mxu0 0.0
        %973 = vmatpush2.msra.mxu0 %v750
        %974 = vmatprep.subr.mxu0 0.0
        %975 = vmatpush2.msra.mxu0 %v749
        %976 = vmatprep.subr.mxu0 0.0
        %977 = vmatpush2.msra.mxu0 %v748
        %978 = vmatprep.subr.mxu0 0.0
        %979 = vmatpush2.msra.mxu0 %v747
        %980 = vmatprep.subr.mxu0 0.0
        %981 = vmatpush2.msra.mxu0 %v746
        %982 = vmatprep.subr.mxu0 0.0
        %983 = vmatpush2.msra.mxu0 %v745
        %984 = vmatprep.subr.mxu0 0.0
        %985 = vmatpush2.msra.mxu0 %v744
        %986 = vmatprep.subr.mxu0 0.0
        %987 = vmatpush2.msra.mxu0 %v743
        %988 = vmatprep.subr.mxu0 0.0
        %989 = vmatpush2.msra.mxu0 %v742
        %990 = vmatprep.subr.mxu0 0.0
        %991 = vmatpush2.msra.mxu0 %v741
        %992 = vmatprep.subr.mxu0 0.0
        %993 = vmatpush2.msra.mxu0 %v740
        %994 = vmatprep.subr.mxu0 0.0
        %995 = vmatpush2.msra.mxu0 %v739
        %996 = vmatprep.mubr.f32.mxu0 %v640
        %997 = vmatmul.mubr.f32.gmra.mxu0 %v639
        %v998 = vpop.f32.mrf.mxu0
        %v999 = vadd.f32 %v914, %v998
        %v1000 = vpop.f32.mrf.mxu0
        %1001 = vmatprep.mubr.f32.mxu0 %v646
        %1002 = vmatmul.mubr.f32.gmra.mxu0 %v645
        %v1003 = vpop.f32.mrf.mxu0
        %v1004 = vadd.f32 %v919, %v1003
        %v1005 = vpop.f32.mrf.mxu0
        %1006 = vmatprep.mubr.f32.mxu0 %v652
        %1007 = vmatmul.mubr.f32.gmra.mxu0 %v651
        %v1008 = vpop.f32.mrf.mxu0
        %v1009 = vadd.f32 %v924, %v1008
        %v1010 = vpop.f32.mrf.mxu0
        %1011 = vmatprep.mubr.f32.mxu0 %v658
        %1012 = vmatmul.mubr.f32.gmra.mxu0 %v657
        %v1013 = vpop.f32.mrf.mxu0
        %v1014 = vadd.f32 %v929, %v1013
        %v1015 = vpop.f32.mrf.mxu0
        %1016 = vdwg.mxu0
        %v1017 = vmax.f32 %v999, 0.0
        %v1018 = vmax.f32 %v1004, 0.0
        %v1019 = vmax.f32 %v1009, 0.0
        %v1020 = vmax.f32 %v1014, 0.0
        %v1021 = vld [vmem:[#allocation7] sm:$0xff]
        %v1022 = vld [vmem:[#allocation7 + $0x8] sm:$0xff]
        %v1023 = vld [vmem:[#allocation7 + $0x10] sm:$0xff]
        %v1024 = vld [vmem:[#allocation7 + $0x18] sm:$0xff]
        %v1025 = vld [vmem:[#allocation7 + $0x20] sm:$0xff]
        %v1026 = vld [vmem:[#allocation7 + $0x28] sm:$0xff]
        %v1027 = vld [vmem:[#allocation7 + $0x30] sm:$0xff]
        %v1028 = vld [vmem:[#allocation7 + $0x38] sm:$0xff]
        %v1029 = vld [vmem:[#allocation7 + $0x40] sm:$0xff]
        %v1030 = vld [vmem:[#allocation7 + $0x48] sm:$0xff]
        %v1031 = vld [vmem:[#allocation7 + $0x50] sm:$0xff]
        %v1032 = vld [vmem:[#allocation7 + $0x58] sm:$0xff]
        %v1033 = vld [vmem:[#allocation7 + $0x60] sm:$0xff]
        %v1034 = vld [vmem:[#allocation7 + $0x68] sm:$0xff]
        %v1035 = vld [vmem:[#allocation7 + $0x70] sm:$0xff]
        %v1036 = vld [vmem:[#allocation7 + $0x78] sm:$0xff]
        %v1037 = vld [vmem:[%s4] sm:$0x1]
        %v1039 = vlaneseq
        %v1040 = vshrl.u32 %v1039, 7
        %v1041 = vsub.s32 0, %v1040
        %v1042 = vrot.slane %v1037, %v1041
        %1044 = vmatprep.subr.mxu0 0.0
        %1045 = vmatpush1.msra.mxu0 %v1036
        %1046 = vmatprep.subr.mxu0 0.0
        %1047 = vmatpush1.msra.mxu0 %v1035
        %1048 = vmatprep.subr.mxu0 0.0
        %1049 = vmatpush1.msra.mxu0 %v1034
        %1050 = vmatprep.subr.mxu0 0.0
        %1051 = vmatpush1.msra.mxu0 %v1033
        %1052 = vmatprep.subr.mxu0 0.0
        %1053 = vmatpush1.msra.mxu0 %v1032
        %1054 = vmatprep.subr.mxu0 0.0
        %1055 = vmatpush1.msra.mxu0 %v1031
        %1056 = vmatprep.subr.mxu0 0.0
        %1057 = vmatpush1.msra.mxu0 %v1030
        %1058 = vmatprep.subr.mxu0 0.0
        %1059 = vmatpush1.msra.mxu0 %v1029
        %1060 = vmatprep.subr.mxu0 0.0
        %1061 = vmatpush1.msra.mxu0 %v1028
        %1062 = vmatprep.subr.mxu0 0.0
        %1063 = vmatpush1.msra.mxu0 %v1027
        %1064 = vmatprep.subr.mxu0 0.0
        %1065 = vmatpush1.msra.mxu0 %v1026
        %1066 = vmatprep.subr.mxu0 0.0
        %1067 = vmatpush1.msra.mxu0 %v1025
        %1068 = vmatprep.subr.mxu0 0.0
        %1069 = vmatpush1.msra.mxu0 %v1024
        %1070 = vmatprep.subr.mxu0 0.0
        %1071 = vmatpush1.msra.mxu0 %v1023
        %1072 = vmatprep.subr.mxu0 0.0
        %1073 = vmatpush1.msra.mxu0 %v1022
        %1074 = vmatprep.subr.mxu0 0.0
        %1075 = vmatpush1.msra.mxu0 %v1021
        %1076 = vmatprep.subr.mxu0 0.0
        %1077 = vmatpush2.msra.mxu0 0.0
        %1078 = vmatprep.subr.mxu0 0.0
        %1079 = vmatpush2.msra.mxu0 0.0
        %1080 = vmatprep.subr.mxu0 0.0
        %1081 = vmatpush2.msra.mxu0 0.0
        %1082 = vmatprep.subr.mxu0 0.0
        %1083 = vmatpush2.msra.mxu0 0.0
        %1084 = vmatprep.subr.mxu0 0.0
        %1085 = vmatpush2.msra.mxu0 0.0
        %1086 = vmatprep.subr.mxu0 0.0
        %1087 = vmatpush2.msra.mxu0 0.0
        %1088 = vmatprep.subr.mxu0 0.0
        %1089 = vmatpush2.msra.mxu0 0.0
        %1090 = vmatprep.subr.mxu0 0.0
        %1091 = vmatpush2.msra.mxu0 0.0
        %1092 = vmatprep.subr.mxu0 0.0
        %1093 = vmatpush2.msra.mxu0 0.0
        %1094 = vmatprep.subr.mxu0 0.0
        %1095 = vmatpush2.msra.mxu0 0.0
        %1096 = vmatprep.subr.mxu0 0.0
        %1097 = vmatpush2.msra.mxu0 0.0
        %1098 = vmatprep.subr.mxu0 0.0
        %1099 = vmatpush2.msra.mxu0 0.0
        %1100 = vmatprep.subr.mxu0 0.0
        %1101 = vmatpush2.msra.mxu0 0.0
        %1102 = vmatprep.subr.mxu0 0.0
        %1103 = vmatpush2.msra.mxu0 0.0
        %1104 = vmatprep.subr.mxu0 0.0
        %1105 = vmatpush2.msra.mxu0 0.0
        %1106 = vmatprep.subr.mxu0 0.0
        %1107 = vmatpush2.msra.mxu0 0.0
        %1108 = vmatprep.mubr.f32.mxu0 0.0
        %1109 = vmatmul.mubr.f32.gmra.mxu0 %v1017
        %v1110 = vpop.f32.mrf.mxu0
        %v1111 = vadd.f32 %v1042, %v1110
        %v1112 = vpop.f32.mrf.mxu0
        %1113 = vmatprep.mubr.f32.mxu0 0.0
        %1114 = vmatmul.mubr.f32.gmra.mxu0 %v1018
        %v1115 = vpop.f32.mrf.mxu0
        %v1116 = vadd.f32 %v1042, %v1115
        %v1117 = vpop.f32.mrf.mxu0
        %1118 = vmatprep.mubr.f32.mxu0 0.0
        %1119 = vmatmul.mubr.f32.gmra.mxu0 %v1019
        %v1120 = vpop.f32.mrf.mxu0
        %v1121 = vadd.f32 %v1042, %v1120
        %v1122 = vpop.f32.mrf.mxu0
        %1123 = vmatprep.mubr.f32.mxu0 0.0
        %1124 = vmatmul.mubr.f32.gmra.mxu0 %v1020
        %v1125 = vpop.f32.mrf.mxu0
        %v1126 = vadd.f32 %v1042, %v1125
        %v1127 = vpop.f32.mrf.mxu0
        %1128 = vdwg.mxu0
        %v1129 = vxor.u32 %v1111, 2147483648
        %v1130 = vxor.u32 %v1116, 2147483648
        %v1131 = vxor.u32 %v1121, 2147483648
        %v1132 = vxor.u32 %v1126, 2147483648
        %v1133 = vmul.f32 %v1129, 1.442695
        %v1134 = vpow.pop %v1133
        %v1135 = vmul.f32 %v1130, 1.442695
        %v1136 = vpow.pop %v1135
        %v1137 = vmul.f32 %v1131, 1.442695
        %v1138 = vpow.pop %v1137
        %v1139 = vmul.f32 %v1132, 1.442695
        %v1140 = vpow.pop %v1139
        %v1141 = vadd.f32 %v1134, 1.0
        %v1142 = vadd.f32 %v1136, 1.0
        %v1143 = vadd.f32 %v1138, 1.0
        %v1144 = vadd.f32 %v1140, 1.0
        %v1145 = vrcp.pop %v1141
        %v1146 = vmul.f32 1.0, %v1145
        %v1147 = vrcp.pop %v1142
        %v1148 = vmul.f32 1.0, %v1147
        %v1149 = vrcp.pop %v1143
        %v1150 = vmul.f32 1.0, %v1149
        %v1151 = vrcp.pop %v1144
        %v1152 = vmul.f32 1.0, %v1151
        %1153 = vst [vmem:[%s272] sm:$0xff] %v1146
        %1154 = vst [vmem:[%s272 + $0x8] sm:$0xff] %v1148
        %1155 = vst [vmem:[%s272 + $0x10] sm:$0xff] %v1150
        %1156 = vst [vmem:[%s272 + $0x18] sm:$0xff] %v1152
        %s1157 = sand.u32 %s141, 1
        %s1158 = scalar_lea.sflag [#allocation4], %s1157
        %s1159 = sand.u32 %s141, 1
        %s1160 = smul.addr %s1159, 32
        %s1161 = scalar_lea.vmem [#allocation8], %s1160
        // Predicated region
        $region53: #{tpu_custom_call.1} parent=39 // pred_check
          %p1162 = pneg %p151
        $region54: #{tpu_custom_call.1} parent=39 // pred_check_branch
          %1164 = sbr.rel (%p1162) target = $region56
        $region55: #{tpu_custom_call.1} parent=39 // pred_region
          %s1165 = smul.u32 4, %s23
          %s1167 = ssub.s32 512, 512
          %1168 = vsyncadd %s1158, %s1167
          %s1169 = smul.addr %s1165, 128
          %s1170 = scalar_lea.hbm %s5, %s1169
          %s1171 = sshll.u32 %s1161, 4
          %s1172 = int_to_ptr.vmem [resolvable:$true] %s1171
          %1177 = dma.vmem_to_hbm [thread:$0]  %s1172, 512, %s1170, %s1158, 128, 128, 8
        $region56: #{tpu_custom_call.1} parent=39 // pred_fallthru
          _
      $region40: #{tpu_custom_call.1} parent=5 // pred_fallthru
        _
      %p1178 = scmp.le.s32.totalorder 2, %s18
      // Predicated region
      $region57: #{tpu_custom_call.1} parent=5 // pred_check
        %p1179 = pneg %p1178
      $region58: #{tpu_custom_call.1} parent=5 // pred_check_branch
        %1181 = sbr.rel (%p1179) target = $region60
      $region59: #{tpu_custom_call.1} parent=5 // pred_region
        %s1182 = ssub.s32 %s18, 2
        // Predicated region
        $region61: #{tpu_custom_call.1} parent=59 // pred_check
          %p1183 = pneg %p157
        $region62: #{tpu_custom_call.1} parent=59 // pred_check_branch
          %1185 = sbr.rel (%p1183) target = $region64
        $region63: #{tpu_custom_call.1} parent=59 // pred_region
          %s1186 = sand.u32 %s142, 1
          %s1187 = scalar_lea.sflag [#allocation4], %s1186
          %s1188 = sand.u32 %s142, 1
          %s1189 = smul.addr %s1188, 32
          %s1190 = scalar_lea.vmem [#allocation8], %s1189
          %1191 = dma.done %s1187, 512
        $region64: #{tpu_custom_call.1} parent=59 // pred_fallthru
          _
      $region60: #{tpu_custom_call.1} parent=5 // pred_fallthru
        _
    $region6: #{tpu_custom_call.1} parent=1 // loop_footer
      %s22 = sadd.s32 1, %s18
    $region7: #{tpu_custom_call.1} parent=1 // loop_footer_branch
      %17 = sbr.rel target = $region3
    $region8: #{tpu_custom_call.1} parent=1 // loop_exit
      _
    %1192 = vsyncpa [#allocation3], 1
    %s1193 = scalar_lea.sflag [#allocation3], 1
    %1194 = vsyncpa %s1193, 1
    %1195 = vsyncpa [#allocation6], 1
    %1196 = vsyncpa [#allocation4], 1
    %s1197 = scalar_lea.sflag [#allocation4], 1
    %1198 = vsyncpa %s1197, 1

</llo_original>
